<compile_context>
chip_gen: v7x
topology: tpu7x:2x2x1
jax: 0.10.0
libtpu: 0.0.40
codegen_flags: <defaults>
</compile_context>

<pallas_src>
import functools

import jax
import jax.numpy as jnp
from jax.experimental import pallas as pl
from jax.experimental.pallas import tpu as pltpu

_SQRT_2_OVER_PI = 0.7978845608028654


def _gelu_new(h):
    # GPT-2's "gelu_new" (tanh approximation).
    return 0.5 * h * (1.0 + jnp.tanh(_SQRT_2_OVER_PI * (h + 0.044715 * h * h * h)))


@functools.lru_cache(maxsize=1)
def _device_kind():
    try:
        return jax.devices()[0].device_kind.lower()
    except Exception:  # pragma: no cover - conservative fallback
        return ""


def _is_pre_v6():
    k = _device_kind()
    return any(t in k for t in ("v2", "v3", "v4", "v5"))


def _adapter_mlp_kernel(x_ref, wfc_ref, bfc_ref, wpr_ref, bpr_ref, out_ref, *,
                        hidden_chunk, gelu_dtype):
    # Cast the f32 row tile to the matmul compute dtype in VMEM (no wrapper-side
    # HBM round trip for the cast).
    x = x_ref[...].astype(wfc_ref.dtype)                    # (tm, nx)
    tm = x_ref.shape[0]
    nx_out = out_ref.shape[1]
    n_state = wfc_ref.shape[1]
    num_chunks = n_state // hidden_chunk                     # wrapper guarantees divisibility

    acc = jnp.zeros((tm, nx_out), jnp.float32)
    # Static Python loop (== fully-unrolled fori_loop) so every weight/bias slice
    # has a static, lane-aligned start -> zero-cost ref views, no dynamic lane offsets.
    for c in range(num_chunks):
        s = c * hidden_chunk
        w1 = wfc_ref[:, s:s + hidden_chunk]                  # (nx, hc)
        b1 = bfc_ref[:, s:s + hidden_chunk]                  # (1, hc) f32
        # c_fc chunk: MXU matmul with f32 accumulation.
        h = jnp.dot(x, w1, preferred_element_type=jnp.float32) + b1
        # gelu epilogue on VPU/EUP (bf16 on v6e/v7x, f32 on v5e).
        h = _gelu_new(h.astype(gelu_dtype))
        # c_proj chunk: accumulate into the f32 output accumulator.
        w2 = wpr_ref[s:s + hidden_chunk, :]                  # (hc, nx)
        acc = acc + jnp.dot(h.astype(wpr_ref.dtype), w2,
                            preferred_element_type=jnp.float32)

    # TODO(synk): nn.Dropout(resid_pdrop) is identity in eval mode; training-mode
    # dropout would use pltpu.prng_seed / prng_random_bits and is not emitted here.
    out_ref[...] = (acc + bpr_ref[...]).astype(out_ref.dtype)   # lane-dense store


@functools.partial(jax.jit, static_argnames=("tm", "compute_dtype", "hidden_chunk"))
def adapter_mlp_forward(x, w_fc, b_fc, w_proj, b_proj, *,
                        tm=None, compute_dtype=jnp.bfloat16, hidden_chunk=None):
    """AdapterMLP forward (eval mode).  x: [B, T, nx] f32 -> [B, T, nx] f32."""
    B, T, nx = x.shape
    n_state = w_fc.shape[1]
    M = B * T
    xm = x.reshape(M, nx)                       # contiguous reshape: free, no HBM pass

    # --- tiling -------------------------------------------------------------
    if tm is None:
        tm = 512 if _is_pre_v6() else 1024      # v5e: smaller scoped VMEM / 1 vst slot
    m_rounded = ((M + 7) // 8) * 8
    tm_eff = max(8, min((tm // 8) * 8, m_rounded))
    # Give both v7x TensorCores work: never let one tile swallow all rows.
    if pl.cdiv(M, tm_eff) < 2 and m_rounded > 8:
        tm_eff = max(8, ((pl.cdiv(M, 2) + 7) // 8) * 8)
    grid = (pl.cdiv(M, tm_eff),)                # partial last block handled by Pallas

    # Hidden-dim chunking (only kicks in for large n_state).
    if hidden_chunk is None:
        hc = n_state
        for cand in (512, 256):
            if n_state > cand and n_state % cand == 0:
                hc = cand
                break
    else:
        hc = hidden_chunk if (hidden_chunk > 0 and n_state % hidden_chunk == 0) else n_state

    # --- operand preparation (weights are tiny; x cast happens in-kernel) ----
    # For repeated adapter calls, pre-cast / store bf16 params outside this jit
    # to avoid the per-call weight cast entirely.
    wfc_c = w_fc.astype(compute_dtype)
    wpr_c = w_proj.astype(compute_dtype)
    bfc2 = b_fc.reshape(1, n_state).astype(jnp.float32)
    bpr2 = b_proj.reshape(1, nx).astype(jnp.float32)

    # gelu epilogue dtype: bf16 where the VPU/EUP support it (v6e/v7x).
    use_bf16 = jnp.dtype(compute_dtype) == jnp.dtype(jnp.bfloat16)
    gelu_dtype = jnp.bfloat16 if (use_bf16 and not _is_pre_v6()) else jnp.float32

    # --- VMEM budget + cost estimate -----------------------------------------
    c_isize = jnp.dtype(compute_dtype).itemsize
    x_isize = jnp.dtype(x.dtype).itemsize
    vmem_needed = (
        2 * tm_eff * nx * x_isize               # x row tiles (double-buffered)
        + 2 * tm_eff * nx * x_isize             # out row tiles (double-buffered)
        + 2 * 2 * nx * n_state * c_isize        # W_fc + W_proj (pipeline default 2 bufs)
        + 2 * (n_state + nx) * 4                # biases
        + tm_eff * nx * c_isize                 # casted x copy
        + tm_eff * hc * 8                       # live hidden chunk (f32 + cast)
        + tm_eff * nx * 4                       # f32 output accumulator
    )
    vmem_limit_bytes = int(min(64 * 2**20, max(32 * 2**20, round(1.5 * vmem_needed))))

    cost = pl.CostEstimate(
        flops=4 * M * nx * n_state,             # two matmuls
        transcendentals=M * n_state,            # tanh in gelu_new
        bytes_accessed=(M * nx * x_isize        # x read
                        + M * nx * x_isize      # out write
                        + 2 * nx * n_state * c_isize   # weights
                        + (n_state + nx) * 4),         # biases
    )

    kernel = functools.partial(_adapter_mlp_kernel,
                               hidden_chunk=hc, gelu_dtype=gelu_dtype)

    out2d = pl.pallas_call(
        kernel,
        out_shape=jax.ShapeDtypeStruct((M, nx), x.dtype),
        grid=grid,
        in_specs=[
            pl.BlockSpec((tm_eff, nx), lambda i: (i, 0)),     # x row tile (pipelined)
            pl.BlockSpec((nx, n_state), lambda i: (0, 0)),    # W_fc (resident)
            pl.BlockSpec((1, n_state), lambda i: (0, 0)),     # b_fc
            pl.BlockSpec((n_state, nx), lambda i: (0, 0)),    # W_proj (resident)
            pl.BlockSpec((1, nx), lambda i: (0, 0)),          # b_proj
        ],
        out_specs=pl.BlockSpec((tm_eff, nx), lambda i: (i, 0)),
        compiler_params=pltpu.CompilerParams(
            dimension_semantics=("parallel",),
            vmem_limit_bytes=vmem_limit_bytes),
        cost_estimate=cost,
    )(xm, wfc_c, bfc2, wpr_c, bpr2)

    return out2d.reshape(B, T, nx)


if __name__ == "__main__":
    # Small shapes consistent with the module: batch=2, seq=10, n_embd=128,
    # adapter bottleneck n_state=256.  M = 20 rows -> the last row tile is
    # partial, exercising the cdiv-grid / masked-write path.
    B, T, NX, N_STATE = 2, 10, 128, 256

    key = jax.random.PRNGKey(0)
    k_x, k_wfc, k_bfc, k_wpr, k_bpr = jax.random.split(key, 5)

    x = jax.random.normal(k_x, (B, T, NX), dtype=jnp.float32)
    w_fc = 0.02 * jax.random.normal(k_wfc, (NX, N_STATE), dtype=jnp.float32)
    b_fc = 0.02 * jax.random.normal(k_bfc, (N_STATE,), dtype=jnp.float32)
    w_proj = 0.02 * jax.random.normal(k_wpr, (N_STATE, NX), dtype=jnp.float32)
    b_proj = 0.02 * jax.random.normal(k_bpr, (NX,), dtype=jnp.float32)

    # Pure-JAX f32 reference of the fused math (eval-mode dropout = identity).
    ref = _gelu_new(x @ w_fc + b_fc) @ w_proj + b_proj

    # (1) f32 matmul inputs + forced hidden chunking: tight agreement, exercises
    #     the chunked accumulation path.
    out_f32 = adapter_mlp_forward(x, w_fc, b_fc, w_proj, b_proj,
                                  compute_dtype=jnp.float32, hidden_chunk=128)
    jax.block_until_ready(out_f32)
    assert out_f32.shape == (B, T, NX)
    err32 = float(jnp.max(jnp.abs(out_f32 - ref)))
    assert jnp.allclose(out_f32, ref, atol=1e-4, rtol=1e-4), err32

    # (2) default fast path: bf16 matmul inputs (f32 accumulation), looser
    #     tolerance for expected bf16 rounding.
    out_bf16 = adapter_mlp_forward(x, w_fc, b_fc, w_proj, b_proj)
    jax.block_until_ready(out_bf16)
    assert out_bf16.shape == (B, T, NX)
    errbf = float(jnp.max(jnp.abs(out_bf16 - ref)))
    assert jnp.allclose(out_bf16, ref, atol=3e-2, rtol=5e-2), errbf

    print("KERNEL_OK")
</pallas_src>

<mosaic_0001>
module attributes {stable_mosaic.version = 11 : i64} {
  func.func @_adapter_mlp_kernel(%arg0: i32, %arg1: memref<16x128xf32, #tpu.memory_space<vmem>>, %arg2: memref<128x256xf32, #tpu.memory_space<vmem>>, %arg3: memref<1x256xf32, #tpu.memory_space<vmem>>, %arg4: memref<256x128xf32, #tpu.memory_space<vmem>>, %arg5: memref<1x128xf32, #tpu.memory_space<vmem>>, %arg6: memref<16x128xf32, #tpu.memory_space<vmem>>) attributes {dimension_semantics = [#tpu.dimension_semantics<parallel>], iteration_bounds = array<i64: 2>, scalar_prefetch = 0 : i64, scratch_operands = 0 : i64, tpu.core_type = #tpu.core_type<tc>, window_params = [{transform_indices = @transform_0, window_bounds = array<i64: 16, 128>}, {pipeline_mode = #tpu.pipeline_mode<synchronous>, transform_indices = @transform_1, window_bounds = array<i64: 128, 256>}, {pipeline_mode = #tpu.pipeline_mode<synchronous>, transform_indices = @transform_2, window_bounds = array<i64: 1, 256>}, {pipeline_mode = #tpu.pipeline_mode<synchronous>, transform_indices = @transform_3, window_bounds = array<i64: 256, 128>}, {pipeline_mode = #tpu.pipeline_mode<synchronous>, transform_indices = @transform_4, window_bounds = array<i64: 1, 128>}, {transform_indices = @transform_5, window_bounds = array<i64: 16, 128>}]} {
    %c0 = arith.constant 0 : index
    %c0_0 = arith.constant 0 : index
    %0 = vector.load %arg1[%c0, %c0_0] : memref<16x128xf32, #tpu.memory_space<vmem>>, vector<16x128xf32>
    %cst = arith.constant 0.000000e+00 : f32
    %1 = vector.broadcast %cst : f32 to vector<16x128xf32>
    %c0_1 = arith.constant 0 : index
    %c0_2 = arith.constant 0 : index
    %2 = vector.load %arg2[%c0_1, %c0_2] : memref<128x256xf32, #tpu.memory_space<vmem>>, vector<128x128xf32>
    %c0_3 = arith.constant 0 : index
    %c0_4 = arith.constant 0 : index
    %3 = vector.load %arg3[%c0_3, %c0_4] : memref<1x256xf32, #tpu.memory_space<vmem>>, vector<1x128xf32>
    %cst_5 = arith.constant dense<0.000000e+00> : vector<16x128xf32>
    %4 = tpu.matmul %0, %2, %cst_5 {dimension_numbers = #tpu.dot_dimension_numbers<[1], [0], [0], [1], [0, 0, 1, 1], [], []>} : vector<16x128xf32>, vector<128x128xf32>, vector<16x128xf32> -> vector<16x128xf32>
    %5 = vector.broadcast %3 : vector<1x128xf32> to vector<16x128xf32>
    %6 = arith.addf %4, %5 : vector<16x128xf32>
    %cst_6 = arith.constant 5.000000e-01 : f32
    %7 = vector.broadcast %cst_6 : f32 to vector<16x128xf32>
    %8 = arith.mulf %7, %6 : vector<16x128xf32>
    %cst_7 = arith.constant 4.471500e-02 : f32
    %9 = vector.broadcast %cst_7 : f32 to vector<16x128xf32>
    %10 = arith.mulf %9, %6 : vector<16x128xf32>
    %11 = arith.mulf %10, %6 : vector<16x128xf32>
    %12 = arith.mulf %11, %6 : vector<16x128xf32>
    %13 = arith.addf %6, %12 : vector<16x128xf32>
    %cst_8 = arith.constant 0.797884583 : f32
    %14 = vector.broadcast %cst_8 : f32 to vector<16x128xf32>
    %15 = arith.mulf %14, %13 : vector<16x128xf32>
    %16 = math.tanh %15 : vector<16x128xf32>
    %cst_9 = arith.constant 1.000000e+00 : f32
    %17 = vector.broadcast %cst_9 : f32 to vector<16x128xf32>
    %18 = arith.addf %17, %16 : vector<16x128xf32>
    %19 = arith.mulf %8, %18 : vector<16x128xf32>
    %c0_10 = arith.constant 0 : index
    %c0_11 = arith.constant 0 : index
    %20 = vector.load %arg4[%c0_10, %c0_11] : memref<256x128xf32, #tpu.memory_space<vmem>>, vector<128x128xf32>
    %cst_12 = arith.constant dense<0.000000e+00> : vector<16x128xf32>
    %21 = tpu.matmul %19, %20, %cst_12 {dimension_numbers = #tpu.dot_dimension_numbers<[1], [0], [0], [1], [0, 0, 1, 1], [], []>} : vector<16x128xf32>, vector<128x128xf32>, vector<16x128xf32> -> vector<16x128xf32>
    %22 = arith.addf %1, %21 : vector<16x128xf32>
    %c0_13 = arith.constant 0 : index
    %c128 = arith.constant 128 : index
    %23 = vector.load %arg2[%c0_13, %c128] : memref<128x256xf32, #tpu.memory_space<vmem>>, vector<128x128xf32>
    %c0_14 = arith.constant 0 : index
    %c128_15 = arith.constant 128 : index
    %24 = vector.load %arg3[%c0_14, %c128_15] : memref<1x256xf32, #tpu.memory_space<vmem>>, vector<1x128xf32>
    %cst_16 = arith.constant dense<0.000000e+00> : vector<16x128xf32>
    %25 = tpu.matmul %0, %23, %cst_16 {dimension_numbers = #tpu.dot_dimension_numbers<[1], [0], [0], [1], [0, 0, 1, 1], [], []>} : vector<16x128xf32>, vector<128x128xf32>, vector<16x128xf32> -> vector<16x128xf32>
    %26 = vector.broadcast %24 : vector<1x128xf32> to vector<16x128xf32>
    %27 = arith.addf %25, %26 : vector<16x128xf32>
    %cst_17 = arith.constant 5.000000e-01 : f32
    %28 = vector.broadcast %cst_17 : f32 to vector<16x128xf32>
    %29 = arith.mulf %28, %27 : vector<16x128xf32>
    %cst_18 = arith.constant 4.471500e-02 : f32
    %30 = vector.broadcast %cst_18 : f32 to vector<16x128xf32>
    %31 = arith.mulf %30, %27 : vector<16x128xf32>
    %32 = arith.mulf %31, %27 : vector<16x128xf32>
    %33 = arith.mulf %32, %27 : vector<16x128xf32>
    %34 = arith.addf %27, %33 : vector<16x128xf32>
    %cst_19 = arith.constant 0.797884583 : f32
    %35 = vector.broadcast %cst_19 : f32 to vector<16x128xf32>
    %36 = arith.mulf %35, %34 : vector<16x128xf32>
    %37 = math.tanh %36 : vector<16x128xf32>
    %cst_20 = arith.constant 1.000000e+00 : f32
    %38 = vector.broadcast %cst_20 : f32 to vector<16x128xf32>
    %39 = arith.addf %38, %37 : vector<16x128xf32>
    %40 = arith.mulf %29, %39 : vector<16x128xf32>
    %c128_21 = arith.constant 128 : index
    %c0_22 = arith.constant 0 : index
    %41 = vector.load %arg4[%c128_21, %c0_22] : memref<256x128xf32, #tpu.memory_space<vmem>>, vector<128x128xf32>
    %cst_23 = arith.constant dense<0.000000e+00> : vector<16x128xf32>
    %42 = tpu.matmul %40, %41, %cst_23 {dimension_numbers = #tpu.dot_dimension_numbers<[1], [0], [0], [1], [0, 0, 1, 1], [], []>} : vector<16x128xf32>, vector<128x128xf32>, vector<16x128xf32> -> vector<16x128xf32>
    %43 = arith.addf %22, %42 : vector<16x128xf32>
    %c0_24 = arith.constant 0 : index
    %c0_25 = arith.constant 0 : index
    %44 = vector.load %arg5[%c0_24, %c0_25] : memref<1x128xf32, #tpu.memory_space<vmem>>, vector<1x128xf32>
    %45 = vector.broadcast %44 : vector<1x128xf32> to vector<16x128xf32>
    %46 = arith.addf %43, %45 : vector<16x128xf32>
    %c0_26 = arith.constant 0 : index
    %c0_27 = arith.constant 0 : index
    %47 = vector.load %arg6[%c0_26, %c0_27] : memref<16x128xf32, #tpu.memory_space<vmem>>, vector<16x128xf32>
    tpu.vector_store %arg6[%c0_26, %c0_27], %46 {strides = array<i32>} : memref<16x128xf32, #tpu.memory_space<vmem>>, vector<16x128xf32>,
    return
  }
  func.func @transform_0(%arg0: i32) -> (i32, i32) {
    %c0_i32 = arith.constant 0 : i32
    %c0_i32_0 = arith.constant 0 : i32
    return %arg0, %c0_i32 : i32, i32
  }
  func.func @transform_1(%arg0: i32) -> (i32, i32) {
    %c0_i32 = arith.constant 0 : i32
    %c0_i32_0 = arith.constant 0 : i32
    %c0_i32_1 = arith.constant 0 : i32
    return %c0_i32, %c0_i32_0 : i32, i32
  }
  func.func @transform_2(%arg0: i32) -> (i32, i32) {
    %c0_i32 = arith.constant 0 : i32
    %c0_i32_0 = arith.constant 0 : i32
    %c0_i32_1 = arith.constant 0 : i32
    return %c0_i32, %c0_i32_0 : i32, i32
  }
  func.func @transform_3(%arg0: i32) -> (i32, i32) {
    %c0_i32 = arith.constant 0 : i32
    %c0_i32_0 = arith.constant 0 : i32
    %c0_i32_1 = arith.constant 0 : i32
    return %c0_i32, %c0_i32_0 : i32, i32
  }
  func.func @transform_4(%arg0: i32) -> (i32, i32) {
    %c0_i32 = arith.constant 0 : i32
    %c0_i32_0 = arith.constant 0 : i32
    %c0_i32_1 = arith.constant 0 : i32
    return %c0_i32, %c0_i32_0 : i32, i32
  }
  func.func @transform_5(%arg0: i32) -> (i32, i32) {
    %c0_i32 = arith.constant 0 : i32
    %c0_i32_0 = arith.constant 0 : i32
    return %arg0, %c0_i32 : i32, i32
  }
}

</mosaic_0001>

<llo_original>
// kernel: adapter_mlp_forward.1
$region0: #{adapter_mlp_forward.1}
  #allocation0 [shape = 'u32[]', space=smem, size = 0x4, offset = 0x4, fixed_abs, tag = 'smem constant byte address 0x4 - core index']
  #allocation1 [shape = 'u32[144,128]{1,0:T(1,128)}', space=vmem, size = 0x12000, scoped, tag = 'internal scratch']
  %s0 = inlined_call_operand.vmem [shape: f32[20,128], index: 0, kind: input, shape index: {}]
  %s1 = inlined_call_operand.hbm [shape: f32[128,256], index: 1, kind: input, shape index: {}]
  %s2 = inlined_call_operand.vmem [shape: f32[1,256], index: 2, kind: input, shape index: {}]
  %s3 = inlined_call_operand.hbm [shape: f32[256,128], index: 3, kind: input, shape index: {}]
  %s4 = inlined_call_operand.vmem [shape: f32[1,128], index: 4, kind: input, shape index: {}]
  %s5 = inlined_call_operand.vmem [shape: f32[20,128], index: 5, kind: output, shape index: {}]
  %s6 = sld [smem:[#allocation0]]
  $region109: #{adapter_mlp_forward.1} parent=0
    _
  %s8 = ssub.s32 1, %s6
  %s9 = scalar_select 0, %s8, %s6
  $region1: #{adapter_mlp_forward.1} parent=0
    #allocation2 [shape = 'u8[131072]{0}', space=vmem, size = 0x20000, scoped, tag = 'input window, operand 1, single buffered']
    #allocation3 [shape = 's32[2]{0}', space=sflag, size = 0x8, scoped, tag = 'scoped memory for adapter_mlp_forward.1']
    #allocation4 [shape = 'u8[131072]{0}', space=vmem, size = 0x20000, scoped, tag = 'input window, operand 3, single buffered']
    #allocation5 [shape = 's32[1]{0}', space=sflag, size = 0x4, scoped, tag = 'scoped memory for adapter_mlp_forward.1']
    #allocation6 [shape = 'u8[16384]{0}', space=vmem, size = 0x4000, scoped, tag = 'output window, operand 0']
    %10 = vsyncpa [#allocation3], 0
    %11 = vsyncpa [#allocation5], 0
    loop: start=0, step=1, limit=4
    $region2: #{adapter_mlp_forward.1} parent=1 // loop_pre_header
      _
    $region3: #{adapter_mlp_forward.1} parent=1 // loop_header
      %s13 = sphi 0, %s17
      %p14 = scmp.ge.s32.totalorder %s13, 4
      %s23 = sphi 0, %s25
      %s26 = sphi 0, %s23
      %s27 = sphi 0, %s26
      %s43 = sphi 0, %s27
      %s47 = sphi 0, %s47
      %s49 = sphi 0, %s47
      %s50 = sphi 0, %s49
      %s64 = sphi 0, %s50
      %s68 = sphi 0, %s68
      %s70 = sphi 0, %s68
      %s71 = sphi 0, %s70
      %s85 = sphi 0, %s71
      %s89 = sphi 0, %s89
      %s91 = sphi 0, %s89
      %s92 = sphi 0, %s91
      %s106 = sphi 0, %s92
      %s110 = sphi 0, %s110
      %s112 = sphi 0, %s110
      %s113 = sphi 0, %s112
      %s127 = sphi 0, %s113
      %s133 = sphi 0, %s135
      %s136 = sphi 0, %s133
      %s137 = sphi 0, %s136
      %s153 = sphi 0, %s137
    $region4: #{adapter_mlp_forward.1} parent=1 // loop_header_branch
      %16 = sbr.rel (%p14) target = $region8
    $region5: #{adapter_mlp_forward.1} parent=1 // loop_body
      %s18 = ssub.s32 %s13, 1
      %s19 = ssub.s32 %s13, 2
      %s20 = sadd.s32 %s13, 1
      %s21 = ssub.s32 %s13, %s20
      %p22 = scmp.eq.s32.totalorder %s21, 0
      %s24 = sadd.s32 %s23, 1
      %s25 = scalar_select %p22, %s23, %s24
      %p28 = pneg %p22
      %p29 = scmp.eq.s32.totalorder %s13, 1
      %p30 = por %p28, %p29
      %p31 = scmp.ne.s32.totalorder %s23, %s26
      %p32 = scmp.eq.s32.totalorder %s13, 0
      %p33 = por %p31, %p32
      %p34 = scmp.ne.s32.totalorder %s23, %s26
      %p35 = scmp.eq.s32.totalorder %s18, 1
      %p36 = por %p34, %p35
      %p37 = scmp.ne.s32.totalorder %s26, %s27
      %p38 = scmp.eq.s32.totalorder %s18, 0
      %p39 = por %p37, %p38
      %p40 = scmp.ne.s32.totalorder %s26, %s27
      %p41 = scmp.eq.s32.totalorder %s19, 1
      %p42 = por %p40, %p41
      %p44 = scmp.ne.s32.totalorder %s27, %s43
      %p45 = scmp.eq.s32.totalorder %s19, 0
      %p46 = por %p44, %p45
      %s48 = sadd.s32 %s47, 1
      %p51 = scmp.eq.s32.totalorder %s13, 1
      %p52 = scmp.ne.s32.totalorder %s47, %s49
      %p53 = scmp.eq.s32.totalorder %s13, 0
      %p54 = por %p52, %p53
      %p55 = scmp.ne.s32.totalorder %s47, %s49
      %p56 = scmp.eq.s32.totalorder %s18, 1
      %p57 = por %p55, %p56
      %p58 = scmp.ne.s32.totalorder %s49, %s50
      %p59 = scmp.eq.s32.totalorder %s18, 0
      %p60 = por %p58, %p59
      %p61 = scmp.ne.s32.totalorder %s49, %s50
      %p62 = scmp.eq.s32.totalorder %s19, 1
      %p63 = por %p61, %p62
      %p65 = scmp.ne.s32.totalorder %s50, %s64
      %p66 = scmp.eq.s32.totalorder %s19, 0
      %p67 = por %p65, %p66
      %s69 = sadd.s32 %s68, 1
      %p72 = scmp.eq.s32.totalorder %s13, 1
      %p73 = scmp.ne.s32.totalorder %s68, %s70
      %p74 = scmp.eq.s32.totalorder %s13, 0
      %p75 = por %p73, %p74
      %p76 = scmp.ne.s32.totalorder %s68, %s70
      %p77 = scmp.eq.s32.totalorder %s18, 1
      %p78 = por %p76, %p77
      %p79 = scmp.ne.s32.totalorder %s70, %s71
      %p80 = scmp.eq.s32.totalorder %s18, 0
      %p81 = por %p79, %p80
      %p82 = scmp.ne.s32.totalorder %s70, %s71
      %p83 = scmp.eq.s32.totalorder %s19, 1
      %p84 = por %p82, %p83
      %p86 = scmp.ne.s32.totalorder %s71, %s85
      %p87 = scmp.eq.s32.totalorder %s19, 0
      %p88 = por %p86, %p87
      %s90 = sadd.s32 %s89, 1
      %p93 = scmp.eq.s32.totalorder %s13, 1
      %p94 = scmp.ne.s32.totalorder %s89, %s91
      %p95 = scmp.eq.s32.totalorder %s13, 0
      %p96 = por %p94, %p95
      %p97 = scmp.ne.s32.totalorder %s89, %s91
      %p98 = scmp.eq.s32.totalorder %s18, 1
      %p99 = por %p97, %p98
      %p100 = scmp.ne.s32.totalorder %s91, %s92
      %p101 = scmp.eq.s32.totalorder %s18, 0
      %p102 = por %p100, %p101
      %p103 = scmp.ne.s32.totalorder %s91, %s92
      %p104 = scmp.eq.s32.totalorder %s19, 1
      %p105 = por %p103, %p104
      %p107 = scmp.ne.s32.totalorder %s92, %s106
      %p108 = scmp.eq.s32.totalorder %s19, 0
      %p109 = por %p107, %p108
      %s111 = sadd.s32 %s110, 1
      %p114 = scmp.eq.s32.totalorder %s13, 1
      %p115 = scmp.ne.s32.totalorder %s110, %s112
      %p116 = scmp.eq.s32.totalorder %s13, 0
      %p117 = por %p115, %p116
      %p118 = scmp.ne.s32.totalorder %s110, %s112
      %p119 = scmp.eq.s32.totalorder %s18, 1
      %p120 = por %p118, %p119
      %p121 = scmp.ne.s32.totalorder %s112, %s113
      %p122 = scmp.eq.s32.totalorder %s18, 0
      %p123 = por %p121, %p122
      %p124 = scmp.ne.s32.totalorder %s112, %s113
      %p125 = scmp.eq.s32.totalorder %s19, 1
      %p126 = por %p124, %p125
      %p128 = scmp.ne.s32.totalorder %s113, %s127
      %p129 = scmp.eq.s32.totalorder %s19, 0
      %p130 = por %p128, %p129
      %s131 = ssub.s32 %s13, %s20
      %p132 = scmp.eq.s32.totalorder %s131, 0
      %s134 = sadd.s32 %s133, 1
      %s135 = scalar_select %p132, %s133, %s134
      %p138 = pneg %p132
      %p139 = scmp.eq.s32.totalorder %s13, 1
      %p140 = por %p138, %p139
      %p141 = scmp.ne.s32.totalorder %s133, %s136
      %p142 = scmp.eq.s32.totalorder %s13, 0
      %p143 = por %p141, %p142
      %p144 = scmp.ne.s32.totalorder %s133, %s136
      %p145 = scmp.eq.s32.totalorder %s18, 1
      %p146 = por %p144, %p145
      %p147 = scmp.ne.s32.totalorder %s136, %s137
      %p148 = scmp.eq.s32.totalorder %s18, 0
      %p149 = por %p147, %p148
      %p150 = scmp.ne.s32.totalorder %s136, %s137
      %p151 = scmp.eq.s32.totalorder %s19, 1
      %p152 = por %p150, %p151
      %p154 = scmp.ne.s32.totalorder %s137, %s153
      %p155 = scmp.eq.s32.totalorder %s19, 0
      %p156 = por %p154, %p155
      %p157 = scmp.le.s32.totalorder 1, %s13
      %p158 = scmp.lt.s32.totalorder %s13, 3
      %p159 = pnand %p157, %p158
      %p160 = pneg %p159
      // Predicated region
      $region9: #{adapter_mlp_forward.1} parent=5 // pred_check
        _
      $region10: #{adapter_mlp_forward.1} parent=5 // pred_check_branch
        %162 = sbr.rel (%p159) target = $region12
      $region11: #{adapter_mlp_forward.1} parent=5 // pred_region
        %s163 = ssub.s32 %s13, 1
        // Predicated region
        $region13: #{adapter_mlp_forward.1} parent=11 // pred_check
          %p164 = pneg %p60
        $region14: #{adapter_mlp_forward.1} parent=11 // pred_check_branch
          %166 = sbr.rel (%p164) target = $region16
        $region15: #{adapter_mlp_forward.1} parent=11 // pred_region
          %s168 = ssub.s32 4096, 4096
          %169 = vsyncadd [#allocation3], %s168
          %s170 = sshll.u32 [#allocation2], 4
          %s171 = int_to_ptr.vmem [resolvable:$true] %s170
          %176 = dma.hbm_to_vmem [thread:$0]  %s1, 4096, %s171, [#allocation3], 256, 256, 16
        $region16: #{adapter_mlp_forward.1} parent=11 // pred_fallthru
          _
        // Predicated region
        $region17: #{adapter_mlp_forward.1} parent=11 // pred_check
          %p177 = pneg %p81
        $region18: #{adapter_mlp_forward.1} parent=11 // pred_check_branch
          %179 = sbr.rel (%p177) target = $region20
        $region19: #{adapter_mlp_forward.1} parent=11 // pred_region
          _
        $region20: #{adapter_mlp_forward.1} parent=11 // pred_fallthru
          _
        // Predicated region
        $region21: #{adapter_mlp_forward.1} parent=11 // pred_check
          %p180 = pneg %p102
        $region22: #{adapter_mlp_forward.1} parent=11 // pred_check_branch
          %182 = sbr.rel (%p180) target = $region24
        $region23: #{adapter_mlp_forward.1} parent=11 // pred_region
          %s184 = ssub.s32 4096, 4096
          %185 = vsyncadd [#allocation5], %s184
          %s186 = sshll.u32 [#allocation4], 4
          %s187 = int_to_ptr.vmem [resolvable:$true] %s186
          %192 = dma.hbm_to_vmem [thread:$0]  %s3, 4096, %s187, [#allocation5], 128, 128, 8
        $region24: #{adapter_mlp_forward.1} parent=11 // pred_fallthru
          _
        // Predicated region
        $region25: #{adapter_mlp_forward.1} parent=11 // pred_check
          %p193 = pneg %p123
        $region26: #{adapter_mlp_forward.1} parent=11 // pred_check_branch
          %195 = sbr.rel (%p193) target = $region28
        $region27: #{adapter_mlp_forward.1} parent=11 // pred_region
          _
        $region28: #{adapter_mlp_forward.1} parent=11 // pred_fallthru
          _
      $region12: #{adapter_mlp_forward.1} parent=5 // pred_fallthru
        _
      %p196 = scmp.lt.s32.totalorder %s13, 2
      // Predicated region
      $region29: #{adapter_mlp_forward.1} parent=5 // pred_check
        %p197 = pneg %p196
      $region30: #{adapter_mlp_forward.1} parent=5 // pred_check_branch
        %199 = sbr.rel (%p197) target = $region32
      $region31: #{adapter_mlp_forward.1} parent=5 // pred_region
        // Predicated region
        $region33: #{adapter_mlp_forward.1} parent=31 // pred_check
          %p200 = pneg %p33
        $region34: #{adapter_mlp_forward.1} parent=31 // pred_check_branch
          %202 = sbr.rel (%p200) target = $region36
        $region35: #{adapter_mlp_forward.1} parent=31 // pred_region
          %s203 = smul.u32 2, %s13
          %s204 = ssub.s32 3, %s203
          %p205 = scmp.lt.s32.totalorder %s204, 2
          %s206 = scalar_select %p205, %s204, 2
          %s207 = smul.u32 128, %s206
          %p208 = scmp.lt.s32.totalorder %s203, 2
          %s209 = scalar_select %p208, %s203, 2
          %s210 = smul.addr %s209, 8
          %s211 = scalar_lea.vmem %s0, %s210
          %s212 = smul.u32 2, %s13
          %s213 = ssub.s32 3, %s212
          %p214 = scmp.lt.s32.totalorder %s213, 2
          %s215 = scalar_select %p214, %s213, 2
          %s216 = smul.u32 128, %s215
        $region36: #{adapter_mlp_forward.1} parent=31 // pred_fallthru
          _
      $region32: #{adapter_mlp_forward.1} parent=5 // pred_fallthru
        _
      %p217 = scmp.le.s32.totalorder 1, %s13
      %p218 = scmp.lt.s32.totalorder %s13, 3
      %p219 = pnand %p217, %p218
      %p220 = pneg %p219
      // Predicated region
      $region37: #{adapter_mlp_forward.1} parent=5 // pred_check
        _
      $region38: #{adapter_mlp_forward.1} parent=5 // pred_check_branch
        %222 = sbr.rel (%p219) target = $region40
      $region39: #{adapter_mlp_forward.1} parent=5 // pred_region
        %s223 = ssub.s32 %s13, 1
        // Predicated region
        $region41: #{adapter_mlp_forward.1} parent=39 // pred_check
          %p224 = pneg %p60
        $region42: #{adapter_mlp_forward.1} parent=39 // pred_check_branch
          %226 = sbr.rel (%p224) target = $region44
        $region43: #{adapter_mlp_forward.1} parent=39 // pred_region
          %227 = dma.done [#allocation3], 4096
        $region44: #{adapter_mlp_forward.1} parent=39 // pred_fallthru
          _
        // Predicated region
        $region45: #{adapter_mlp_forward.1} parent=39 // pred_check
          %p228 = pneg %p102
        $region46: #{adapter_mlp_forward.1} parent=39 // pred_check_branch
          %230 = sbr.rel (%p228) target = $region48
        $region47: #{adapter_mlp_forward.1} parent=39 // pred_region
          %231 = dma.done [#allocation5], 4096
        $region48: #{adapter_mlp_forward.1} parent=39 // pred_fallthru
          _
        %s232 = smul.u32 2, %s18
        %s233 = ssub.s32 3, %s232
        %p234 = scmp.lt.s32.totalorder %s233, 2
        %s235 = scalar_select %p234, %s233, 2
        %s236 = smul.u32 128, %s235
        %p237 = scmp.lt.s32.totalorder %s232, 2
        %s238 = scalar_select %p237, %s232, 2
        %s239 = smul.addr %s238, 8
        %s240 = scalar_lea.vmem %s0, %s239
        %p241 = pneg %p39
        %p242 = pneg %p36
        %p243 = pneg %p60
        %p244 = pneg %p57
        %p245 = pneg %p81
        %p246 = pneg %p78
        %p247 = pneg %p102
        %p248 = pneg %p99
        %p249 = pneg %p123
        %p250 = pneg %p120
        %p251 = pneg %p149
        %p252 = pneg %p146
        %s253 = sand.u32 %s136, 1
        %s254 = sand.u32 %s136, 1
        %s255 = smul.addr %s254, 16
        %s256 = scalar_lea.vmem [#allocation6], %s255
        %s257 = smul.u32 2, %s18
        %s258 = ssub.s32 3, %s257
        %p259 = scmp.lt.s32.totalorder %s258, 2
        %s260 = scalar_select %p259, %s258, 2
        %s261 = smul.u32 128, %s260
        %p262 = scmp.lt.s32.totalorder %s257, 2
        %s263 = scalar_select %p262, %s257, 2
        %s264 = smul.addr %s263, 8
        %s265 = scalar_lea.vmem %s0, %s264
        %s266 = smul.u32 2, %s18
        %s267 = ssub.s32 3, %s266
        %p268 = scmp.lt.s32.totalorder %s267, 2
        %s269 = scalar_select %p268, %s267, 2
        %s270 = smul.u32 128, %s269
        %s271 = smul.u32 2, %s18
        %s272 = ssub.s32 3, %s271
        %p273 = scmp.lt.s32.totalorder %s272, 2
        %s274 = scalar_select %p273, %s272, 2
        %s275 = smul.u32 128, %s274
        %v276 = vld [vmem:[%s265] sm:$0xff]
        %v277 = vld [vmem:[%s265 + $0x8] sm:$0xff]
        %v278 = vld [vmem:[#allocation2] sm:$0xff]
        %v279 = vld [vmem:[#allocation2 + $0x10] sm:$0xff]
        %v280 = vld [vmem:[#allocation2 + $0x20] sm:$0xff]
        %v281 = vld [vmem:[#allocation2 + $0x30] sm:$0xff]
        %v282 = vld [vmem:[#allocation2 + $0x40] sm:$0xff]
        %v283 = vld [vmem:[#allocation2 + $0x50] sm:$0xff]
        %v284 = vld [vmem:[#allocation2 + $0x60] sm:$0xff]
        %v285 = vld [vmem:[#allocation2 + $0x70] sm:$0xff]
        %v286 = vld [vmem:[#allocation2 + $0x80] sm:$0xff]
        %v287 = vld [vmem:[#allocation2 + $0x90] sm:$0xff]
        %v288 = vld [vmem:[#allocation2 + $0xa0] sm:$0xff]
        %v289 = vld [vmem:[#allocation2 + $0xb0] sm:$0xff]
        %v290 = vld [vmem:[#allocation2 + $0xc0] sm:$0xff]
        %v291 = vld [vmem:[#allocation2 + $0xd0] sm:$0xff]
        %v292 = vld [vmem:[#allocation2 + $0xe0] sm:$0xff]
        %v293 = vld [vmem:[#allocation2 + $0xf0] sm:$0xff]
        %v294 = vld [vmem:[%s2] sm:$0x1]
        %v296 = vlaneseq
        %v297 = vshrl.u32 %v296, 7
        %v298 = vsub.s32 0, %v297
        %v299 = vrot.slane %v294, %v298
        %301 = vmatprep.subr.mxu0 0.0
        %302 = vmatpush1.msra.mxu0 %v278
        %303 = vmatprep.subr.mxu0 0.0
        %304 = vmatpush1.msra.mxu0 %v279
        %305 = vmatprep.subr.mxu0 0.0
        %306 = vmatpush1.msra.mxu0 %v280
        %307 = vmatprep.subr.mxu0 0.0
        %308 = vmatpush1.msra.mxu0 %v281
        %309 = vmatprep.subr.mxu0 0.0
        %310 = vmatpush1.msra.mxu0 %v282
        %311 = vmatprep.subr.mxu0 0.0
        %312 = vmatpush1.msra.mxu0 %v283
        %313 = vmatprep.subr.mxu0 0.0
        %314 = vmatpush1.msra.mxu0 %v284
        %315 = vmatprep.subr.mxu0 0.0
        %316 = vmatpush1.msra.mxu0 %v285
        %317 = vmatprep.subr.mxu0 0.0
        %318 = vmatpush1.msra.mxu0 %v286
        %319 = vmatprep.subr.mxu0 0.0
        %320 = vmatpush1.msra.mxu0 %v287
        %321 = vmatprep.subr.mxu0 0.0
        %322 = vmatpush1.msra.mxu0 %v288
        %323 = vmatprep.subr.mxu0 0.0
        %324 = vmatpush1.msra.mxu0 %v289
        %325 = vmatprep.subr.mxu0 0.0
        %326 = vmatpush1.msra.mxu0 %v290
        %327 = vmatprep.subr.mxu0 0.0
        %328 = vmatpush1.msra.mxu0 %v291
        %329 = vmatprep.subr.mxu0 0.0
        %330 = vmatpush1.msra.mxu0 %v292
        %331 = vmatprep.subr.mxu0 0.0
        %332 = vmatpush1.msra.mxu0 %v293
        %333 = vmatprep.subr.mxu0 0.0
        %334 = vmatpush1.msra.mxu0 0.0
        %335 = vmatprep.subr.mxu0 0.0
        %336 = vmatpush1.msra.mxu0 0.0
        %337 = vmatprep.subr.mxu0 0.0
        %338 = vmatpush1.msra.mxu0 0.0
        %339 = vmatprep.subr.mxu0 0.0
        %340 = vmatpush1.msra.mxu0 0.0
        %341 = vmatprep.subr.mxu0 0.0
        %342 = vmatpush1.msra.mxu0 0.0
        %343 = vmatprep.subr.mxu0 0.0
        %344 = vmatpush1.msra.mxu0 0.0
        %345 = vmatprep.subr.mxu0 0.0
        %346 = vmatpush1.msra.mxu0 0.0
        %347 = vmatprep.subr.mxu0 0.0
        %348 = vmatpush1.msra.mxu0 0.0
        %349 = vmatprep.subr.mxu0 0.0
        %350 = vmatpush1.msra.mxu0 0.0
        %351 = vmatprep.subr.mxu0 0.0
        %352 = vmatpush1.msra.mxu0 0.0
        %353 = vmatprep.subr.mxu0 0.0
        %354 = vmatpush1.msra.mxu0 0.0
        %355 = vmatprep.subr.mxu0 0.0
        %356 = vmatpush1.msra.mxu0 0.0
        %357 = vmatprep.subr.mxu0 0.0
        %358 = vmatpush1.msra.mxu0 0.0
        %359 = vmatprep.subr.mxu0 0.0
        %360 = vmatpush1.msra.mxu0 0.0
        %361 = vmatprep.subr.mxu0 0.0
        %362 = vmatpush1.msra.mxu0 0.0
        %363 = vmatprep.subr.mxu0 0.0
        %364 = vmatpush1.msra.mxu0 0.0
        %365 = vmatprep.mubr.f32.mxu0 0.0
        %366 = vmatmul.mubr.f32.gmra.mrb[0].mxu0 %v276
        %v367 = vpop.f32.mrb[0].mxu0
        %v368 = vadd.f32 %v299, %v367
        %v369 = vpop.f32.mrb[0].mxu0
        %370 = vmatprep.mubr.f32.mxu0 0.0
        %371 = vmatmul.mubr.f32.gmra.mrb[0].mxu0 %v277
        %v372 = vpop.f32.mrb[0].mxu0
        %v373 = vadd.f32 %v299, %v372
        %v374 = vpop.f32.mrb[0].mxu0
        %375 = vdwg.mxu0
        %v376 = vmul.f32 %v368, 0.5
        %v377 = vmul.f32 %v373, 0.5
        %v378 = vmul.f32 %v368, 0.044715
        %v379 = vmul.f32 %v373, 0.044715
        %v380 = vmul.f32 %v378, %v368
        %v381 = vmul.f32 %v379, %v373
        %v382 = vmul.f32 %v380, %v368
        %v383 = vmul.f32 %v381, %v373
        %v384 = vadd.f32 %v368, %v382
        %v385 = vadd.f32 %v373, %v383
        %v386 = vmul.f32 %v384, 0.7978846
        %v387 = vmul.f32 %v385, 0.7978846
        %v388 = vtanh.pop %v386
        %v389 = vtanh.pop %v387
        %v390 = vadd.f32 %v388, 1.0
        %v391 = vadd.f32 %v389, 1.0
        %v392 = vmul.f32 %v376, %v390
        %v393 = vmul.f32 %v377, %v391
        %v394 = vld [vmem:[#allocation4] sm:$0xff]
        %v395 = vld [vmem:[#allocation4 + $0x8] sm:$0xff]
        %v396 = vld [vmem:[#allocation4 + $0x10] sm:$0xff]
        %v397 = vld [vmem:[#allocation4 + $0x18] sm:$0xff]
        %v398 = vld [vmem:[#allocation4 + $0x20] sm:$0xff]
        %v399 = vld [vmem:[#allocation4 + $0x28] sm:$0xff]
        %v400 = vld [vmem:[#allocation4 + $0x30] sm:$0xff]
        %v401 = vld [vmem:[#allocation4 + $0x38] sm:$0xff]
        %v402 = vld [vmem:[#allocation4 + $0x40] sm:$0xff]
        %v403 = vld [vmem:[#allocation4 + $0x48] sm:$0xff]
        %v404 = vld [vmem:[#allocation4 + $0x50] sm:$0xff]
        %v405 = vld [vmem:[#allocation4 + $0x58] sm:$0xff]
        %v406 = vld [vmem:[#allocation4 + $0x60] sm:$0xff]
        %v407 = vld [vmem:[#allocation4 + $0x68] sm:$0xff]
        %v408 = vld [vmem:[#allocation4 + $0x70] sm:$0xff]
        %v409 = vld [vmem:[#allocation4 + $0x78] sm:$0xff]
        %v410 = vld [vmem:[#allocation2 + $0x8] sm:$0xff]
        %v411 = vld [vmem:[#allocation2 + $0x18] sm:$0xff]
        %v412 = vld [vmem:[#allocation2 + $0x28] sm:$0xff]
        %v413 = vld [vmem:[#allocation2 + $0x38] sm:$0xff]
        %v414 = vld [vmem:[#allocation2 + $0x48] sm:$0xff]
        %v415 = vld [vmem:[#allocation2 + $0x58] sm:$0xff]
        %v416 = vld [vmem:[#allocation2 + $0x68] sm:$0xff]
        %v417 = vld [vmem:[#allocation2 + $0x78] sm:$0xff]
        %v418 = vld [vmem:[#allocation2 + $0x88] sm:$0xff]
        %v419 = vld [vmem:[#allocation2 + $0x98] sm:$0xff]
        %v420 = vld [vmem:[#allocation2 + $0xa8] sm:$0xff]
        %v421 = vld [vmem:[#allocation2 + $0xb8] sm:$0xff]
        %v422 = vld [vmem:[#allocation2 + $0xc8] sm:$0xff]
        %v423 = vld [vmem:[#allocation2 + $0xd8] sm:$0xff]
        %v424 = vld [vmem:[#allocation2 + $0xe8] sm:$0xff]
        %v425 = vld [vmem:[#allocation2 + $0xf8] sm:$0xff]
        %v426 = vld [vmem:[%s2 + $0x1] sm:$0x1]
        %v428 = vlaneseq
        %v429 = vshrl.u32 %v428, 7
        %v430 = vsub.s32 0, %v429
        %v431 = vrot.slane %v426, %v430
        %433 = vmatprep.subr.mxu0 0.0
        %434 = vmatpush1.msra.mxu0 %v410
        %435 = vmatprep.subr.mxu0 0.0
        %436 = vmatpush1.msra.mxu0 %v411
        %437 = vmatprep.subr.mxu0 0.0
        %438 = vmatpush1.msra.mxu0 %v412
        %439 = vmatprep.subr.mxu0 0.0
        %440 = vmatpush1.msra.mxu0 %v413
        %441 = vmatprep.subr.mxu0 0.0
        %442 = vmatpush1.msra.mxu0 %v414
        %443 = vmatprep.subr.mxu0 0.0
        %444 = vmatpush1.msra.mxu0 %v415
        %445 = vmatprep.subr.mxu0 0.0
        %446 = vmatpush1.msra.mxu0 %v416
        %447 = vmatprep.subr.mxu0 0.0
        %448 = vmatpush1.msra.mxu0 %v417
        %449 = vmatprep.subr.mxu0 0.0
        %450 = vmatpush1.msra.mxu0 %v418
        %451 = vmatprep.subr.mxu0 0.0
        %452 = vmatpush1.msra.mxu0 %v419
        %453 = vmatprep.subr.mxu0 0.0
        %454 = vmatpush1.msra.mxu0 %v420
        %455 = vmatprep.subr.mxu0 0.0
        %456 = vmatpush1.msra.mxu0 %v421
        %457 = vmatprep.subr.mxu0 0.0
        %458 = vmatpush1.msra.mxu0 %v422
        %459 = vmatprep.subr.mxu0 0.0
        %460 = vmatpush1.msra.mxu0 %v423
        %461 = vmatprep.subr.mxu0 0.0
        %462 = vmatpush1.msra.mxu0 %v424
        %463 = vmatprep.subr.mxu0 0.0
        %464 = vmatpush1.msra.mxu0 %v425
        %465 = vmatprep.subr.mxu0 0.0
        %466 = vmatpush1.msra.mxu0 0.0
        %467 = vmatprep.subr.mxu0 0.0
        %468 = vmatpush1.msra.mxu0 0.0
        %469 = vmatprep.subr.mxu0 0.0
        %470 = vmatpush1.msra.mxu0 0.0
        %471 = vmatprep.subr.mxu0 0.0
        %472 = vmatpush1.msra.mxu0 0.0
        %473 = vmatprep.subr.mxu0 0.0
        %474 = vmatpush1.msra.mxu0 0.0
        %475 = vmatprep.subr.mxu0 0.0
        %476 = vmatpush1.msra.mxu0 0.0
        %477 = vmatprep.subr.mxu0 0.0
        %478 = vmatpush1.msra.mxu0 0.0
        %479 = vmatprep.subr.mxu0 0.0
        %480 = vmatpush1.msra.mxu0 0.0
        %481 = vmatprep.subr.mxu0 0.0
        %482 = vmatpush1.msra.mxu0 0.0
        %483 = vmatprep.subr.mxu0 0.0
        %484 = vmatpush1.msra.mxu0 0.0
        %485 = vmatprep.subr.mxu0 0.0
        %486 = vmatpush1.msra.mxu0 0.0
        %487 = vmatprep.subr.mxu0 0.0
        %488 = vmatpush1.msra.mxu0 0.0
        %489 = vmatprep.subr.mxu0 0.0
        %490 = vmatpush1.msra.mxu0 0.0
        %491 = vmatprep.subr.mxu0 0.0
        %492 = vmatpush1.msra.mxu0 0.0
        %493 = vmatprep.subr.mxu0 0.0
        %494 = vmatpush1.msra.mxu0 0.0
        %495 = vmatprep.subr.mxu0 0.0
        %496 = vmatpush1.msra.mxu0 0.0
        %497 = vmatprep.mubr.f32.mxu0 0.0
        %498 = vmatmul.mubr.f32.gmra.mrb[0].mxu0 %v276
        %v499 = vpop.f32.mrb[0].mxu0
        %v500 = vadd.f32 %v431, %v499
        %v501 = vpop.f32.mrb[0].mxu0
        %502 = vmatprep.mubr.f32.mxu0 0.0
        %503 = vmatmul.mubr.f32.gmra.mrb[0].mxu0 %v277
        %v504 = vpop.f32.mrb[0].mxu0
        %v505 = vadd.f32 %v431, %v504
        %v506 = vpop.f32.mrb[0].mxu0
        %507 = vdwg.mxu0
        %v508 = vmul.f32 %v500, 0.5
        %v509 = vmul.f32 %v505, 0.5
        %v510 = vmul.f32 %v500, 0.044715
        %v511 = vmul.f32 %v505, 0.044715
        %v512 = vmul.f32 %v510, %v500
        %v513 = vmul.f32 %v511, %v505
        %v514 = vmul.f32 %v512, %v500
        %v515 = vmul.f32 %v513, %v505
        %v516 = vadd.f32 %v500, %v514
        %v517 = vadd.f32 %v505, %v515
        %v518 = vmul.f32 %v516, 0.7978846
        %v519 = vmul.f32 %v517, 0.7978846
        %v520 = vtanh.pop %v518
        %v521 = vtanh.pop %v519
        %v522 = vadd.f32 %v520, 1.0
        %v523 = vadd.f32 %v521, 1.0
        %v524 = vmul.f32 %v508, %v522
        %v525 = vmul.f32 %v509, %v523
        %v526 = vld [vmem:[#allocation4 + $0x80] sm:$0xff]
        %v527 = vld [vmem:[#allocation4 + $0x88] sm:$0xff]
        %v528 = vld [vmem:[#allocation4 + $0x90] sm:$0xff]
        %v529 = vld [vmem:[#allocation4 + $0x98] sm:$0xff]
        %v530 = vld [vmem:[#allocation4 + $0xa0] sm:$0xff]
        %v531 = vld [vmem:[#allocation4 + $0xa8] sm:$0xff]
        %v532 = vld [vmem:[#allocation4 + $0xb0] sm:$0xff]
        %v533 = vld [vmem:[#allocation4 + $0xb8] sm:$0xff]
        %v534 = vld [vmem:[#allocation4 + $0xc0] sm:$0xff]
        %v535 = vld [vmem:[#allocation4 + $0xc8] sm:$0xff]
        %v536 = vld [vmem:[#allocation4 + $0xd0] sm:$0xff]
        %v537 = vld [vmem:[#allocation4 + $0xd8] sm:$0xff]
        %v538 = vld [vmem:[#allocation4 + $0xe0] sm:$0xff]
        %v539 = vld [vmem:[#allocation4 + $0xe8] sm:$0xff]
        %v540 = vld [vmem:[#allocation4 + $0xf0] sm:$0xff]
        %v541 = vld [vmem:[#allocation4 + $0xf8] sm:$0xff]
        %542 = vmatprep.subr.mxu0 0.0
        %543 = vmatpush1.msra.mxu0 %v526
        %544 = vmatprep.subr.mxu0 0.0
        %545 = vmatpush1.msra.mxu0 %v527
        %546 = vmatprep.subr.mxu0 0.0
        %547 = vmatpush1.msra.mxu0 %v528
        %548 = vmatprep.subr.mxu0 0.0
        %549 = vmatpush1.msra.mxu0 %v529
        %550 = vmatprep.subr.mxu0 0.0
        %551 = vmatpush1.msra.mxu0 %v530
        %552 = vmatprep.subr.mxu0 0.0
        %553 = vmatpush1.msra.mxu0 %v531
        %554 = vmatprep.subr.mxu0 0.0
        %555 = vmatpush1.msra.mxu0 %v532
        %556 = vmatprep.subr.mxu0 0.0
        %557 = vmatpush1.msra.mxu0 %v533
        %558 = vmatprep.subr.mxu0 0.0
        %559 = vmatpush1.msra.mxu0 %v534
        %560 = vmatprep.subr.mxu0 0.0
        %561 = vmatpush1.msra.mxu0 %v535
        %562 = vmatprep.subr.mxu0 0.0
        %563 = vmatpush1.msra.mxu0 %v536
        %564 = vmatprep.subr.mxu0 0.0
        %565 = vmatpush1.msra.mxu0 %v537
        %566 = vmatprep.subr.mxu0 0.0
        %567 = vmatpush1.msra.mxu0 %v538
        %568 = vmatprep.subr.mxu0 0.0
        %569 = vmatpush1.msra.mxu0 %v539
        %570 = vmatprep.subr.mxu0 0.0
        %571 = vmatpush1.msra.mxu0 %v540
        %572 = vmatprep.subr.mxu0 0.0
        %573 = vmatpush1.msra.mxu0 %v541
        %574 = vmatprep.subr.mxu0 0.0
        %575 = vmatpush1.msra.mxu0 0.0
        %576 = vmatprep.subr.mxu0 0.0
        %577 = vmatpush1.msra.mxu0 0.0
        %578 = vmatprep.subr.mxu0 0.0
        %579 = vmatpush1.msra.mxu0 0.0
        %580 = vmatprep.subr.mxu0 0.0
        %581 = vmatpush1.msra.mxu0 0.0
        %582 = vmatprep.subr.mxu0 0.0
        %583 = vmatpush1.msra.mxu0 0.0
        %584 = vmatprep.subr.mxu0 0.0
        %585 = vmatpush1.msra.mxu0 0.0
        %586 = vmatprep.subr.mxu0 0.0
        %587 = vmatpush1.msra.mxu0 0.0
        %588 = vmatprep.subr.mxu0 0.0
        %589 = vmatpush1.msra.mxu0 0.0
        %590 = vmatprep.subr.mxu0 0.0
        %591 = vmatpush1.msra.mxu0 0.0
        %592 = vmatprep.subr.mxu0 0.0
        %593 = vmatpush1.msra.mxu0 0.0
        %594 = vmatprep.subr.mxu0 0.0
        %595 = vmatpush1.msra.mxu0 0.0
        %596 = vmatprep.subr.mxu0 0.0
        %597 = vmatpush1.msra.mxu0 0.0
        %598 = vmatprep.subr.mxu0 0.0
        %599 = vmatpush1.msra.mxu0 0.0
        %600 = vmatprep.subr.mxu0 0.0
        %601 = vmatpush1.msra.mxu0 0.0
        %602 = vmatprep.subr.mxu0 0.0
        %603 = vmatpush1.msra.mxu0 0.0
        %604 = vmatprep.subr.mxu0 0.0
        %605 = vmatpush1.msra.mxu0 0.0
        %606 = vmatprep.mubr.f32.mxu0 0.0
        %607 = vmatmul.mubr.f32.gmra.mrb[0].mxu0 %v524
        %v608 = vpop.f32.mrb[0].mxu0
        %v609 = vadd.f32 0.0, %v608
        %v610 = vpop.f32.mrb[0].mxu0
        %611 = vmatprep.mubr.f32.mxu0 0.0
        %612 = vmatmul.mubr.f32.gmra.mrb[0].mxu0 %v525
        %v613 = vpop.f32.mrb[0].mxu0
        %v614 = vadd.f32 0.0, %v613
        %v615 = vpop.f32.mrb[0].mxu0
        %616 = vdwg.mxu0
        %617 = vmatprep.subr.mxu0 0.0
        %618 = vmatpush1.msra.mxu0 %v394
        %619 = vmatprep.subr.mxu0 0.0
        %620 = vmatpush1.msra.mxu0 %v395
        %621 = vmatprep.subr.mxu0 0.0
        %622 = vmatpush1.msra.mxu0 %v396
        %623 = vmatprep.subr.mxu0 0.0
        %624 = vmatpush1.msra.mxu0 %v397
        %625 = vmatprep.subr.mxu0 0.0
        %626 = vmatpush1.msra.mxu0 %v398
        %627 = vmatprep.subr.mxu0 0.0
        %628 = vmatpush1.msra.mxu0 %v399
        %629 = vmatprep.subr.mxu0 0.0
        %630 = vmatpush1.msra.mxu0 %v400
        %631 = vmatprep.subr.mxu0 0.0
        %632 = vmatpush1.msra.mxu0 %v401
        %633 = vmatprep.subr.mxu0 0.0
        %634 = vmatpush1.msra.mxu0 %v402
        %635 = vmatprep.subr.mxu0 0.0
        %636 = vmatpush1.msra.mxu0 %v403
        %637 = vmatprep.subr.mxu0 0.0
        %638 = vmatpush1.msra.mxu0 %v404
        %639 = vmatprep.subr.mxu0 0.0
        %640 = vmatpush1.msra.mxu0 %v405
        %641 = vmatprep.subr.mxu0 0.0
        %642 = vmatpush1.msra.mxu0 %v406
        %643 = vmatprep.subr.mxu0 0.0
        %644 = vmatpush1.msra.mxu0 %v407
        %645 = vmatprep.subr.mxu0 0.0
        %646 = vmatpush1.msra.mxu0 %v408
        %647 = vmatprep.subr.mxu0 0.0
        %648 = vmatpush1.msra.mxu0 %v409
        %649 = vmatprep.subr.mxu0 0.0
        %650 = vmatpush1.msra.mxu0 0.0
        %651 = vmatprep.subr.mxu0 0.0
        %652 = vmatpush1.msra.mxu0 0.0
        %653 = vmatprep.subr.mxu0 0.0
        %654 = vmatpush1.msra.mxu0 0.0
        %655 = vmatprep.subr.mxu0 0.0
        %656 = vmatpush1.msra.mxu0 0.0
        %657 = vmatprep.subr.mxu0 0.0
        %658 = vmatpush1.msra.mxu0 0.0
        %659 = vmatprep.subr.mxu0 0.0
        %660 = vmatpush1.msra.mxu0 0.0
        %661 = vmatprep.subr.mxu0 0.0
        %662 = vmatpush1.msra.mxu0 0.0
        %663 = vmatprep.subr.mxu0 0.0
        %664 = vmatpush1.msra.mxu0 0.0
        %665 = vmatprep.subr.mxu0 0.0
        %666 = vmatpush1.msra.mxu0 0.0
        %667 = vmatprep.subr.mxu0 0.0
        %668 = vmatpush1.msra.mxu0 0.0
        %669 = vmatprep.subr.mxu0 0.0
        %670 = vmatpush1.msra.mxu0 0.0
        %671 = vmatprep.subr.mxu0 0.0
        %672 = vmatpush1.msra.mxu0 0.0
        %673 = vmatprep.subr.mxu0 0.0
        %674 = vmatpush1.msra.mxu0 0.0
        %675 = vmatprep.subr.mxu0 0.0
        %676 = vmatpush1.msra.mxu0 0.0
        %677 = vmatprep.subr.mxu0 0.0
        %678 = vmatpush1.msra.mxu0 0.0
        %679 = vmatprep.subr.mxu0 0.0
        %680 = vmatpush1.msra.mxu0 0.0
        %681 = vmatprep.mubr.f32.mxu0 0.0
        %682 = vmatmul.mubr.f32.gmra.mrb[0].mxu0 %v392
        %v683 = vpop.f32.mrb[0].mxu0
        %v684 = vadd.f32 %v609, %v683
        %v685 = vpop.f32.mrb[0].mxu0
        %686 = vmatprep.mubr.f32.mxu0 0.0
        %687 = vmatmul.mubr.f32.gmra.mrb[0].mxu0 %v393
        %v688 = vpop.f32.mrb[0].mxu0
        %v689 = vadd.f32 %v614, %v688
        %v690 = vpop.f32.mrb[0].mxu0
        %691 = vdwg.mxu0
        %v692 = vld [vmem:[%s4] sm:$0x1]
        %v694 = vlaneseq
        %v695 = vshrl.u32 %v694, 7
        %v696 = vsub.s32 0, %v695
        %v697 = vrot.slane %v692, %v696
        %v699 = vadd.f32 %v684, %v697
        %v700 = vadd.f32 %v689, %v697
        %701 = vst [vmem:[%s256] sm:$0xff] %v699
        %702 = vst [vmem:[%s256 + $0x8] sm:$0xff] %v700
        %s703 = sand.u32 %s136, 1
        %s704 = sand.u32 %s136, 1
        %s705 = smul.addr %s704, 16
        %s706 = scalar_lea.vmem [#allocation6], %s705
        // Predicated region
        $region49: #{adapter_mlp_forward.1} parent=39 // pred_check
          %p707 = pneg %p146
        $region50: #{adapter_mlp_forward.1} parent=39 // pred_check_branch
          %709 = sbr.rel (%p707) target = $region52
        $region51: #{adapter_mlp_forward.1} parent=39 // pred_region
          %s710 = smul.u32 2, %s18
          %s711 = ssub.s32 3, %s710
          %p712 = scmp.lt.s32.totalorder %s711, 2
          %s713 = scalar_select %p712, %s711, 2
          %s714 = smul.u32 128, %s713
          %p715 = scmp.ne.s32.totalorder 0, %s714
          %s716 = smul.addr %s710, 8
          %s717 = scalar_lea.vmem %s5, %s716
          // Predicated region
          $region53: #{adapter_mlp_forward.1} parent=51 // pred_check
            %p718 = pneg %p715
          $region54: #{adapter_mlp_forward.1} parent=51 // pred_check_branch
            %720 = sbr.rel (%p718) target = $region56
          $region55: #{adapter_mlp_forward.1} parent=51 // pred_region
            // Predicated region
            $region57: #{adapter_mlp_forward.1} parent=55 // pred_check
              _
            $region58: #{adapter_mlp_forward.1} parent=55 // pred_check_branch
              %722 = sbr.rel (0) target = $region60
            $region59: #{adapter_mlp_forward.1} parent=55 // pred_region
              // Predicated region
              $region79: #{adapter_mlp_forward.1} parent=59 // pred_check
                _
              $region80: #{adapter_mlp_forward.1} parent=59 // pred_check_branch
                %773 = sbr.rel (0) target = $region82
              $region81: #{adapter_mlp_forward.1} parent=59 // pred_region
                %s774 = sshrl.u32 %s713, 1
                // While loop
                $region83: #{adapter_mlp_forward.1} parent=81 // loop_pre_header
                  _
                $region84: #{adapter_mlp_forward.1} parent=81 // loop_header
                  %s776 = sphi 0, %s778
                  %p777 = scmp.ge.s32.totalorder %s776, %s774
                  %s781 = sphi 0, %s790
                  %s782 = sphi %s706, %s793
                  %s783 = sphi %s717, %s794
                $region85: #{adapter_mlp_forward.1} parent=81 // loop_header_branch
                  %780 = sbr.rel (%p777) target = $region89
                $region86: #{adapter_mlp_forward.1} parent=81 // loop_body
                  %v784 = vld [vmem:[%s782] sm:$0xff]
                  %785 = vst [vmem:[%s783] sm:$0xff] %v784
                  %v786 = vld [vmem:[%s782 + $0x8] sm:$0xff]
                  %787 = vst [vmem:[%s783 + $0x8] sm:$0xff] %v786
                  %s788 = sadd.s32 1, %s781
                  %p789 = scmp.ge.s32.totalorder %s788, %s774
                  %s790 = scalar_select %p789, 0, %s788
                  %s791 = smul.u32 %s790, 16
                  %s792 = smul.u32 %s790, 16
                  %s793 = scalar_lea.vmem %s706, %s791 [#allocation6]
                  %s794 = scalar_lea.vmem %s717, %s792
                $region87: #{adapter_mlp_forward.1} parent=81 // loop_footer
                  %s778 = sadd.s32 %s776, 1
                $region88: #{adapter_mlp_forward.1} parent=81 // loop_footer_branch
                  %775 = sbr.rel target = $region84
                $region89: #{adapter_mlp_forward.1} parent=81 // loop_exit
                  _
                %s795 = sshrl.u32 %s713, 1
                %s796 = sand.u32 %s713, 1
                %s797 = smul.u32 %s795, 2
                %s798 = smul.u32 8, %s797
                %s799 = scalar_lea.vmem %s706, %s798 [#allocation6]
                %s800 = smul.u32 8, %s797
                %s801 = scalar_lea.vmem %s717, %s800
                // While loop
                $region90: #{adapter_mlp_forward.1} parent=81 // loop_pre_header
                  _
                $region91: #{adapter_mlp_forward.1} parent=81 // loop_header
                  %s803 = sphi 0, %s805
                  %p804 = scmp.ge.s32.totalorder %s803, %s796
                  %s808 = sphi 0, %s815
                  %s809 = sphi %s799, %s818
                  %s810 = sphi %s801, %s819
                $region92: #{adapter_mlp_forward.1} parent=81 // loop_header_branch
                  %807 = sbr.rel (%p804) target = $region96
                $region93: #{adapter_mlp_forward.1} parent=81 // loop_body
                  %v811 = vld [vmem:[%s809] sm:$0xff]
                  %812 = vst [vmem:[%s810] sm:$0xff] %v811
                  %s813 = sadd.s32 1, %s808
                  %p814 = scmp.ge.s32.totalorder %s813, %s796
                  %s815 = scalar_select %p814, 0, %s813
                  %s816 = smul.u32 %s815, 8
                  %s817 = smul.u32 %s815, 8
                  %s818 = scalar_lea.vmem %s799, %s816 [#allocation6]
                  %s819 = scalar_lea.vmem %s801, %s817
                $region94: #{adapter_mlp_forward.1} parent=81 // loop_footer
                  %s805 = sadd.s32 %s803, 1
                $region95: #{adapter_mlp_forward.1} parent=81 // loop_footer_branch
                  %802 = sbr.rel target = $region91
                $region96: #{adapter_mlp_forward.1} parent=81 // loop_exit
                  _
              $region82: #{adapter_mlp_forward.1} parent=59 // pred_fallthru
                _
              // Predicated region
              $region97: #{adapter_mlp_forward.1} parent=59 // pred_check
                _
              $region98: #{adapter_mlp_forward.1} parent=59 // pred_check_branch
                %821 = sbr.rel target = $region100
              $region99: #{adapter_mlp_forward.1} parent=59 // pred_region
                _
              $region100: #{adapter_mlp_forward.1} parent=59 // pred_fallthru
                _
            $region60: #{adapter_mlp_forward.1} parent=55 // pred_fallthru
              _
            // Predicated region
            $region61: #{adapter_mlp_forward.1} parent=55 // pred_check
              _
            $region62: #{adapter_mlp_forward.1} parent=55 // pred_check_branch
              %724 = sbr.rel target = $region64
            $region63: #{adapter_mlp_forward.1} parent=55 // pred_region
              %s726 = sshrl.u32 %s713, 1
              // While loop
              $region65: #{adapter_mlp_forward.1} parent=63 // loop_pre_header
                _
              $region66: #{adapter_mlp_forward.1} parent=63 // loop_header
                %s728 = sphi 0, %s730
                %p729 = scmp.ge.s32.totalorder %s728, %s726
                %s733 = sphi 0, %s742
                %s734 = sphi %s706, %s745
                %s735 = sphi %s717, %s746
              $region67: #{adapter_mlp_forward.1} parent=63 // loop_header_branch
                %732 = sbr.rel (%p729) target = $region71
              $region68: #{adapter_mlp_forward.1} parent=63 // loop_body
                %v736 = vld [vmem:[%s734] sm:$0xff]
                %737 = vst [vmem:[%s735] sm:$0xff] %v736
                %v738 = vld [vmem:[%s734 + $0x8] sm:$0xff]
                %739 = vst [vmem:[%s735 + $0x8] sm:$0xff] %v738
                %s740 = sadd.s32 1, %s733
                %p741 = scmp.ge.s32.totalorder %s740, %s726
                %s742 = scalar_select %p741, 0, %s740
                %s743 = smul.u32 %s742, 16
                %s744 = smul.u32 %s742, 16
                %s745 = scalar_lea.vmem %s706, %s743 [#allocation6]
                %s746 = scalar_lea.vmem %s717, %s744
              $region69: #{adapter_mlp_forward.1} parent=63 // loop_footer
                %s730 = sadd.s32 %s728, 1
              $region70: #{adapter_mlp_forward.1} parent=63 // loop_footer_branch
                %727 = sbr.rel target = $region66
              $region71: #{adapter_mlp_forward.1} parent=63 // loop_exit
                _
              %s747 = sshrl.u32 %s713, 1
              %s748 = sand.u32 %s713, 1
              %s749 = smul.u32 %s747, 2
              %s750 = smul.u32 8, %s749
              %s751 = scalar_lea.vmem %s706, %s750 [#allocation6]
              %s752 = smul.u32 8, %s749
              %s753 = scalar_lea.vmem %s717, %s752
              // While loop
              $region72: #{adapter_mlp_forward.1} parent=63 // loop_pre_header
                _
              $region73: #{adapter_mlp_forward.1} parent=63 // loop_header
                %s755 = sphi 0, %s757
                %p756 = scmp.ge.s32.totalorder %s755, %s748
                %s760 = sphi 0, %s767
                %s761 = sphi %s751, %s770
                %s762 = sphi %s753, %s771
              $region74: #{adapter_mlp_forward.1} parent=63 // loop_header_branch
                %759 = sbr.rel (%p756) target = $region78
              $region75: #{adapter_mlp_forward.1} parent=63 // loop_body
                %v763 = vld [vmem:[%s761] sm:$0xff]
                %764 = vst [vmem:[%s762] sm:$0xff] %v763
                %s765 = sadd.s32 1, %s760
                %p766 = scmp.ge.s32.totalorder %s765, %s748
                %s767 = scalar_select %p766, 0, %s765
                %s768 = smul.u32 %s767, 8
                %s769 = smul.u32 %s767, 8
                %s770 = scalar_lea.vmem %s751, %s768 [#allocation6]
                %s771 = scalar_lea.vmem %s753, %s769
              $region76: #{adapter_mlp_forward.1} parent=63 // loop_footer
                %s757 = sadd.s32 %s755, 1
              $region77: #{adapter_mlp_forward.1} parent=63 // loop_footer_branch
                %754 = sbr.rel target = $region73
              $region78: #{adapter_mlp_forward.1} parent=63 // loop_exit
                _
            $region64: #{adapter_mlp_forward.1} parent=55 // pred_fallthru
              _
          $region56: #{adapter_mlp_forward.1} parent=51 // pred_fallthru
            _
          %822 = vnop
        $region52: #{adapter_mlp_forward.1} parent=39 // pred_fallthru
          _
      $region40: #{adapter_mlp_forward.1} parent=5 // pred_fallthru
        _
      %p823 = scmp.le.s32.totalorder 2, %s13
      // Predicated region
      $region101: #{adapter_mlp_forward.1} parent=5 // pred_check
        %p824 = pneg %p823
      $region102: #{adapter_mlp_forward.1} parent=5 // pred_check_branch
        %826 = sbr.rel (%p824) target = $region104
      $region103: #{adapter_mlp_forward.1} parent=5 // pred_region
        %s827 = ssub.s32 %s13, 2
        // Predicated region
        $region105: #{adapter_mlp_forward.1} parent=103 // pred_check
          %p828 = pneg %p152
        $region106: #{adapter_mlp_forward.1} parent=103 // pred_check_branch
          %830 = sbr.rel (%p828) target = $region108
        $region107: #{adapter_mlp_forward.1} parent=103 // pred_region
          %s831 = sand.u32 %s137, 1
          %s832 = sand.u32 %s137, 1
          %s833 = smul.addr %s832, 16
          %s834 = scalar_lea.vmem [#allocation6], %s833
        $region108: #{adapter_mlp_forward.1} parent=103 // pred_fallthru
          _
      $region104: #{adapter_mlp_forward.1} parent=5 // pred_fallthru
        _
    $region6: #{adapter_mlp_forward.1} parent=1 // loop_footer
      %s17 = sadd.s32 1, %s13
    $region7: #{adapter_mlp_forward.1} parent=1 // loop_footer_branch
      %12 = sbr.rel target = $region3
    $region8: #{adapter_mlp_forward.1} parent=1 // loop_exit
      _
    %835 = vsyncpa [#allocation3], 1
    %s836 = scalar_lea.sflag [#allocation3], 1
    %837 = vsyncpa %s836, 1
    %838 = vsyncpa [#allocation5], 1

</llo_original>
